<compile_context>
chip_gen: v7x
topology: tpu7x:2x2x1
jax: 0.10.0
libtpu: 0.0.40
codegen_flags: <defaults>
</compile_context>

<pallas_src>
import functools

import jax
import jax.numpy as jnp
from jax.experimental import pallas as pl
from jax.experimental.pallas import tpu as pltpu

NUM_CLASSES = 131                      # self._out_feature
TK = 512                               # K tile (rows of W) for the large-F path
SINGLE_SHOT_W_BYTES = 4 * 1024 * 1024  # bf16 W at/below this -> single-shot kernel


# --------------------------------------------------------------------------- #
# Kernels
# --------------------------------------------------------------------------- #
def _fruits_single_kernel(x_ref, w_ref, b_ref, o_ref):
    """Single shot: o = softmax(x @ W + b). Everything resident in VMEM."""
    logits = jnp.dot(x_ref[...], w_ref[...],
                     preferred_element_type=jnp.float32) + b_ref[...]
    m = jnp.max(logits, axis=-1, keepdims=True)
    e = jnp.exp(logits - m)
    o_ref[...] = e / jnp.sum(e, axis=-1, keepdims=True)


def _fruits_tiled_kernel(x_ref, w_ref, b_ref, o_ref):
    """K-tiled: accumulate x_k @ W_k directly into the resident f32 output
    block; bias + softmax only on the last reduction step."""
    k = pl.program_id(0)

    @pl.when(k == 0)
    def _init():
        o_ref[...] = jnp.zeros_like(o_ref)

    # x is fully resident as [grid_k, B, TK]; indexing the leading dim by the
    # grid step is a cheap dynamic index (no per-step x DMA).
    o_ref[...] += jnp.dot(x_ref[k], w_ref[...],
                          preferred_element_type=jnp.float32)

    @pl.when(k == pl.num_programs(0) - 1)
    def _finalize():
        logits = o_ref[...] + b_ref[...]
        m = jnp.max(logits, axis=-1, keepdims=True)
        e = jnp.exp(logits - m)
        o_ref[...] = e / jnp.sum(e, axis=-1, keepdims=True)


# --------------------------------------------------------------------------- #
# One-time weight prep (backbone weights are frozen)
# --------------------------------------------------------------------------- #
def prepare_backbone_params(w, b, *, tile_k=TK,
                            single_shot_bytes=SINGLE_SHOT_W_BYTES):
    """Cast W to bf16 once; zero-pad the K tail only if the tiled path is used."""
    f_dim, c_dim = w.shape
    assert c_dim == NUM_CLASSES
    w_bf16 = w.astype(jnp.bfloat16)
    if f_dim * c_dim * 2 > single_shot_bytes:           # tiled path: pad K tail
        f_pad = pl.cdiv(f_dim, tile_k) * tile_k
        if f_pad != f_dim:
            w_bf16 = jnp.pad(w_bf16, ((0, f_pad - f_dim), (0, 0)))
    b_row = b.astype(jnp.float32).reshape(1, c_dim)
    return w_bf16, b_row


# --------------------------------------------------------------------------- #
# Forward (jitted; only x reshape/cast happens per call)
# --------------------------------------------------------------------------- #
def _fruits_forward(x_nchw, w_bf16, b_row, *, tile_k=TK,
                    single_shot_bytes=SINGLE_SHOT_W_BYTES):
    batch = x_nchw.shape[0]
    f_pad, c_dim = w_bf16.shape

    x_flat = x_nchw.reshape(batch, -1).astype(jnp.bfloat16)    # [B, F]
    f_dim = x_flat.shape[1]
    if f_pad > f_dim:  # zero K-tail (matches the zero-padded W rows)
        x_flat = jnp.pad(x_flat, ((0, 0), (0, f_pad - f_dim)))

    out_shape = jax.ShapeDtypeStruct((batch, c_dim), jnp.float32)

    if f_pad * c_dim * 2 <= single_shot_bytes:
        # Single-shot: whole x, W, b, out resident in VMEM; kernel runs once.
        return pl.pallas_call(
            _fruits_single_kernel,
            out_shape=out_shape,
        )(x_flat, w_bf16, b_row)

    # Large-F path: K-tiled GEMV with W streamed from HBM.
    grid_k = f_pad // tile_k
    x_blocks = x_flat.reshape(batch, grid_k, tile_k).transpose(1, 0, 2)

    return pl.pallas_call(
        _fruits_tiled_kernel,
        out_shape=out_shape,
        grid_spec=pltpu.PrefetchScalarGridSpec(
            num_scalar_prefetch=0,
            grid=(grid_k,),
            in_specs=[
                pl.BlockSpec((grid_k, batch, tile_k), lambda k: (0, 0, 0)),  # x resident
                pl.BlockSpec((tile_k, c_dim), lambda k: (k, 0)),             # W streamed
                pl.BlockSpec((1, c_dim), lambda k: (0, 0)),                  # bias resident
            ],
            out_specs=pl.BlockSpec((batch, c_dim), lambda k: (0, 0)),        # resident acc
        ),
        compiler_params=pltpu.CompilerParams(
            dimension_semantics=("arbitrary",),   # K is a reduction axis
        ),
    )(x_blocks, w_bf16, b_row)


fruits_forward = jax.jit(
    _fruits_forward, static_argnames=("tile_k", "single_shot_bytes"))


# --------------------------------------------------------------------------- #
# Self-test
# --------------------------------------------------------------------------- #
if __name__ == "__main__":
    key = jax.random.PRNGKey(0)
    kx, kw, kb, kx2, kw2 = jax.random.split(key, 5)

    def ref_softmax(x_, w_, b_):
        xf = x_.reshape(x_.shape[0], -1).astype(jnp.bfloat16).astype(jnp.float32)
        wf = w_.astype(jnp.bfloat16).astype(jnp.float32)
        return jax.nn.softmax(xf @ wf + b_, axis=1)

    # --- case 1: small input, single-shot path (F = 4*16*16 = 1024) --------- #
    B, C_in, H, W = 2, 4, 16, 16
    F = C_in * H * W
    x = jax.random.normal(kx, (B, C_in, H, W), dtype=jnp.float32)
    w = jax.random.normal(kw, (F, NUM_CLASSES), dtype=jnp.float32) * 0.02
    b = jax.random.normal(kb, (NUM_CLASSES,), dtype=jnp.float32) * 0.01

    w_p, b_p = prepare_backbone_params(w, b)        # one-time (frozen backbone)
    out = jax.block_until_ready(fruits_forward(x, w_p, b_p))

    assert out.shape == (B, NUM_CLASSES)
    assert bool(jnp.all(jnp.abs(jnp.sum(out, axis=1) - 1.0) < 1e-4))
    assert bool(jnp.all(jnp.abs(out - ref_softmax(x, w, b)) < 2e-3))

    # --- case 2: F = 1280 (not a TK multiple), forced K-tiled path ----------- #
    C_in2 = 5
    F2 = C_in2 * H * W
    x2 = jax.random.normal(kx2, (B, C_in2, H, W), dtype=jnp.float32)
    w2 = jax.random.normal(kw2, (F2, NUM_CLASSES), dtype=jnp.float32) * 0.02

    w2_p, b2_p = prepare_backbone_params(w2, b, single_shot_bytes=0)
    out2 = jax.block_until_ready(
        fruits_forward(x2, w2_p, b2_p, single_shot_bytes=0))

    assert out2.shape == (B, NUM_CLASSES)
    assert bool(jnp.all(jnp.abs(jnp.sum(out2, axis=1) - 1.0) < 1e-4))
    assert bool(jnp.all(jnp.abs(out2 - ref_softmax(x2, w2, b)) < 2e-3))

    print("KERNEL_OK")
</pallas_src>

<mosaic_0001>
module attributes {stable_mosaic.version = 11 : i64} {
  func.func @_fruits_single_kernel(%arg0: memref<2x1024xbf16, #tpu.memory_space<vmem>>, %arg1: memref<1024x131xbf16, #tpu.memory_space<vmem>>, %arg2: memref<1x131xf32, #tpu.memory_space<vmem>>, %arg3: memref<2x131xf32, #tpu.memory_space<vmem>>) attributes {dimension_semantics = [], scalar_prefetch = 0 : i64, scratch_operands = 0 : i64, tpu.core_type = #tpu.core_type<tc>} {
    %c0 = arith.constant 0 : index
    %c0_0 = arith.constant 0 : index
    %0 = vector.load %arg0[%c0, %c0_0] : memref<2x1024xbf16, #tpu.memory_space<vmem>>, vector<2x1024xbf16>
    %c0_1 = arith.constant 0 : index
    %c0_2 = arith.constant 0 : index
    %1 = vector.load %arg1[%c0_1, %c0_2] : memref<1024x131xbf16, #tpu.memory_space<vmem>>, vector<1024x131xbf16>
    %cst = arith.constant dense<0.000000e+00> : vector<2x131xf32>
    %2 = tpu.matmul %0, %1, %cst {dimension_numbers = #tpu.dot_dimension_numbers<[1], [0], [0], [1], [0, 0, 1, 1], [], []>} : vector<2x1024xbf16>, vector<1024x131xbf16>, vector<2x131xf32> -> vector<2x131xf32>
    %c0_3 = arith.constant 0 : index
    %c0_4 = arith.constant 0 : index
    %3 = vector.load %arg2[%c0_3, %c0_4] : memref<1x131xf32, #tpu.memory_space<vmem>>, vector<1x131xf32>
    %4 = vector.broadcast %3 : vector<1x131xf32> to vector<2x131xf32>
    %5 = arith.addf %2, %4 : vector<2x131xf32>
    %cst_5 = arith.constant dense<0xFF800000> : vector<2xf32>
    %6 = vector.multi_reduction <maximumf>, %5, %cst_5 [1] : vector<2x131xf32> to vector<2xf32>
    %7 = vector.shape_cast %6 : vector<2xf32> to vector<2x1xf32>
    %8 = vector.broadcast %7 : vector<2x1xf32> to vector<2x131xf32>
    %9 = arith.subf %5, %8 : vector<2x131xf32>
    %10 = math.exp %9 : vector<2x131xf32>
    %cst_6 = arith.constant dense<0.000000e+00> : vector<2xf32>
    %11 = vector.multi_reduction <add>, %10, %cst_6 [1] : vector<2x131xf32> to vector<2xf32>
    %12 = vector.shape_cast %11 : vector<2xf32> to vector<2x1xf32>
    %13 = vector.broadcast %12 : vector<2x1xf32> to vector<2x131xf32>
    %14 = arith.divf %10, %13 : vector<2x131xf32>
    %c0_7 = arith.constant 0 : index
    %c0_8 = arith.constant 0 : index
    %15 = vector.load %arg3[%c0_7, %c0_8] : memref<2x131xf32, #tpu.memory_space<vmem>>, vector<2x131xf32>
    tpu.vector_store %arg3[%c0_7, %c0_8], %14 {strides = array<i32>} : memref<2x131xf32, #tpu.memory_space<vmem>>, vector<2x131xf32>,
    return
  }
}

</mosaic_0001>

<llo_original>
// kernel: _fruits_forward.1
$region0: #{_fruits_forward.1}
  #allocation0 [shape = 'u32[]', space=smem, size = 0x4, offset = 0x4, fixed_abs, tag = 'smem constant byte address 0x4 - core index']
  #allocation1 [shape = 'u32[144,128]{1,0:T(1,128)}', space=vmem, size = 0x12000, scoped, tag = 'internal scratch']
  %s0 = inlined_call_operand.vmem [shape: bf16[2,1024], index: 0, kind: input, shape index: {}]
  %s1 = inlined_call_operand.vmem [shape: bf16[1024,131], index: 1, kind: input, shape index: {}]
  %s2 = inlined_call_operand.vmem [shape: f32[1,131], index: 2, kind: input, shape index: {}]
  %s3 = inlined_call_operand.hbm [shape: f32[2,131], index: 3, kind: output, shape index: {}]
  %s4 = sld [smem:[#allocation0]]
  $region22: #{_fruits_forward.1} parent=0
    _
  %s6 = ssub.s32 1, %s4
  %s7 = scalar_select 0, %s6, %s4
  $region1: #{_fruits_forward.1} parent=0
    #allocation2 [shape = 'u8[2048]{0}', space=vmem, size = 0x800, scoped, tag = 'output window, operand 0, single buffered']
    #allocation3 [shape = 's32[1]{0}', space=sflag, size = 0x4, scoped, tag = 'scoped memory for _fruits_forward.1']
    %8 = vsyncpa [#allocation3], 0
    // Predicated region
    $region2: #{_fruits_forward.1} parent=1 // pred_check
      _
    $region3: #{_fruits_forward.1} parent=1 // pred_check_branch
      %10 = sbr.rel (0) target = $region5
    $region4: #{_fruits_forward.1} parent=1 // pred_region
      _
    $region5: #{_fruits_forward.1} parent=1 // pred_fallthru
      _
    // Predicated region
    $region6: #{_fruits_forward.1} parent=1 // pred_check
      _
    $region7: #{_fruits_forward.1} parent=1 // pred_check_branch
      %12 = sbr.rel (0) target = $region9
    $region8: #{_fruits_forward.1} parent=1 // pred_region
      _
    $region9: #{_fruits_forward.1} parent=1 // pred_fallthru
      _
    // Predicated region
    $region10: #{_fruits_forward.1} parent=1 // pred_check
      _
    $region11: #{_fruits_forward.1} parent=1 // pred_check_branch
      %14 = sbr.rel (0) target = $region13
    $region12: #{_fruits_forward.1} parent=1 // pred_region
      _
    $region13: #{_fruits_forward.1} parent=1 // pred_fallthru
      _
    %v15 = vld [vmem:[%s0] sm:$0xff]
    %v16 = vld [vmem:[%s1] sm:$0xff]
    %v17 = vld [vmem:[%s1 + $0x8] sm:$0xff]
    %v18 = vld [vmem:[%s1 + $0x10] sm:$0xff]
    %v19 = vld [vmem:[%s1 + $0x18] sm:$0xff]
    %v20 = vld [vmem:[%s1 + $0x20] sm:$0xff]
    %v21 = vld [vmem:[%s1 + $0x28] sm:$0xff]
    %v22 = vld [vmem:[%s1 + $0x30] sm:$0xff]
    %v23 = vld [vmem:[%s1 + $0x38] sm:$0xff]
    %v24 = vld [vmem:[%s1 + $0x40] sm:$0xff]
    %v25 = vld [vmem:[%s1 + $0x48] sm:$0xff]
    %v26 = vld [vmem:[%s1 + $0x50] sm:$0xff]
    %v27 = vld [vmem:[%s1 + $0x58] sm:$0xff]
    %v28 = vld [vmem:[%s1 + $0x60] sm:$0xff]
    %v29 = vld [vmem:[%s1 + $0x68] sm:$0xff]
    %v30 = vld [vmem:[%s1 + $0x70] sm:$0xff]
    %v31 = vld [vmem:[%s1 + $0x78] sm:$0xff]
    %v32 = vld [vmem:[%s1 + $0x80] sm:$0xff]
    %v33 = vld [vmem:[%s1 + $0x88] sm:$0xff]
    %v34 = vld [vmem:[%s1 + $0x90] sm:$0xff]
    %v35 = vld [vmem:[%s1 + $0x98] sm:$0xff]
    %v36 = vld [vmem:[%s1 + $0xa0] sm:$0xff]
    %v37 = vld [vmem:[%s1 + $0xa8] sm:$0xff]
    %v38 = vld [vmem:[%s1 + $0xb0] sm:$0xff]
    %v39 = vld [vmem:[%s1 + $0xb8] sm:$0xff]
    %v40 = vld [vmem:[%s1 + $0xc0] sm:$0xff]
    %v41 = vld [vmem:[%s1 + $0xc8] sm:$0xff]
    %v42 = vld [vmem:[%s1 + $0xd0] sm:$0xff]
    %v43 = vld [vmem:[%s1 + $0xd8] sm:$0xff]
    %v44 = vld [vmem:[%s1 + $0xe0] sm:$0xff]
    %v45 = vld [vmem:[%s1 + $0xe8] sm:$0xff]
    %v46 = vld [vmem:[%s1 + $0xf0] sm:$0xff]
    %v47 = vld [vmem:[%s1 + $0xf8] sm:$0xff]
    %v48 = vld [vmem:[%s1 + $0x100] sm:$0xff]
    %v49 = vld [vmem:[%s1 + $0x108] sm:$0xff]
    %v50 = vld [vmem:[%s1 + $0x110] sm:$0xff]
    %v51 = vld [vmem:[%s1 + $0x118] sm:$0xff]
    %v52 = vld [vmem:[%s1 + $0x120] sm:$0xff]
    %v53 = vld [vmem:[%s1 + $0x128] sm:$0xff]
    %v54 = vld [vmem:[%s1 + $0x130] sm:$0xff]
    %v55 = vld [vmem:[%s1 + $0x138] sm:$0xff]
    %v56 = vld [vmem:[%s1 + $0x140] sm:$0xff]
    %v57 = vld [vmem:[%s1 + $0x148] sm:$0xff]
    %v58 = vld [vmem:[%s1 + $0x150] sm:$0xff]
    %v59 = vld [vmem:[%s1 + $0x158] sm:$0xff]
    %v60 = vld [vmem:[%s1 + $0x160] sm:$0xff]
    %v61 = vld [vmem:[%s1 + $0x168] sm:$0xff]
    %v62 = vld [vmem:[%s1 + $0x170] sm:$0xff]
    %v63 = vld [vmem:[%s1 + $0x178] sm:$0xff]
    %v64 = vld [vmem:[%s1 + $0x180] sm:$0xff]
    %v65 = vld [vmem:[%s1 + $0x188] sm:$0xff]
    %v66 = vld [vmem:[%s1 + $0x190] sm:$0xff]
    %v67 = vld [vmem:[%s1 + $0x198] sm:$0xff]
    %v68 = vld [vmem:[%s1 + $0x1a0] sm:$0xff]
    %v69 = vld [vmem:[%s1 + $0x1a8] sm:$0xff]
    %v70 = vld [vmem:[%s1 + $0x1b0] sm:$0xff]
    %v71 = vld [vmem:[%s1 + $0x1b8] sm:$0xff]
    %v72 = vld [vmem:[%s1 + $0x1c0] sm:$0xff]
    %v73 = vld [vmem:[%s1 + $0x1c8] sm:$0xff]
    %v74 = vld [vmem:[%s1 + $0x1d0] sm:$0xff]
    %v75 = vld [vmem:[%s1 + $0x1d8] sm:$0xff]
    %v76 = vld [vmem:[%s1 + $0x1e0] sm:$0xff]
    %v77 = vld [vmem:[%s1 + $0x1e8] sm:$0xff]
    %v78 = vld [vmem:[%s1 + $0x1f0] sm:$0xff]
    %v79 = vld [vmem:[%s1 + $0x1f8] sm:$0xff]
    %v80 = vld [vmem:[%s1 + $0x200] sm:$0xff]
    %v81 = vld [vmem:[%s1 + $0x208] sm:$0xff]
    %v82 = vld [vmem:[%s1 + $0x210] sm:$0xff]
    %v83 = vld [vmem:[%s1 + $0x218] sm:$0xff]
    %v84 = vld [vmem:[%s1 + $0x220] sm:$0xff]
    %v85 = vld [vmem:[%s1 + $0x228] sm:$0xff]
    %v86 = vld [vmem:[%s1 + $0x230] sm:$0xff]
    %v87 = vld [vmem:[%s1 + $0x238] sm:$0xff]
    %v88 = vld [vmem:[%s1 + $0x240] sm:$0xff]
    %v89 = vld [vmem:[%s1 + $0x248] sm:$0xff]
    %v90 = vld [vmem:[%s1 + $0x250] sm:$0xff]
    %v91 = vld [vmem:[%s1 + $0x258] sm:$0xff]
    %v92 = vld [vmem:[%s1 + $0x260] sm:$0xff]
    %v93 = vld [vmem:[%s1 + $0x268] sm:$0xff]
    %v94 = vld [vmem:[%s1 + $0x270] sm:$0xff]
    %v95 = vld [vmem:[%s1 + $0x278] sm:$0xff]
    %v96 = vld [vmem:[%s1 + $0x280] sm:$0xff]
    %v97 = vld [vmem:[%s1 + $0x288] sm:$0xff]
    %v98 = vld [vmem:[%s1 + $0x290] sm:$0xff]
    %v99 = vld [vmem:[%s1 + $0x298] sm:$0xff]
    %v100 = vld [vmem:[%s1 + $0x2a0] sm:$0xff]
    %v101 = vld [vmem:[%s1 + $0x2a8] sm:$0xff]
    %v102 = vld [vmem:[%s1 + $0x2b0] sm:$0xff]
    %v103 = vld [vmem:[%s1 + $0x2b8] sm:$0xff]
    %v104 = vld [vmem:[%s1 + $0x2c0] sm:$0xff]
    %v105 = vld [vmem:[%s1 + $0x2c8] sm:$0xff]
    %v106 = vld [vmem:[%s1 + $0x2d0] sm:$0xff]
    %v107 = vld [vmem:[%s1 + $0x2d8] sm:$0xff]
    %v108 = vld [vmem:[%s1 + $0x2e0] sm:$0xff]
    %v109 = vld [vmem:[%s1 + $0x2e8] sm:$0xff]
    %v110 = vld [vmem:[%s1 + $0x2f0] sm:$0xff]
    %v111 = vld [vmem:[%s1 + $0x2f8] sm:$0xff]
    %v112 = vld [vmem:[%s1 + $0x300] sm:$0xff]
    %v113 = vld [vmem:[%s1 + $0x308] sm:$0xff]
    %v114 = vld [vmem:[%s1 + $0x310] sm:$0xff]
    %v115 = vld [vmem:[%s1 + $0x318] sm:$0xff]
    %v116 = vld [vmem:[%s1 + $0x320] sm:$0xff]
    %v117 = vld [vmem:[%s1 + $0x328] sm:$0xff]
    %v118 = vld [vmem:[%s1 + $0x330] sm:$0xff]
    %v119 = vld [vmem:[%s1 + $0x338] sm:$0xff]
    %v120 = vld [vmem:[%s1 + $0x340] sm:$0xff]
    %v121 = vld [vmem:[%s1 + $0x348] sm:$0xff]
    %v122 = vld [vmem:[%s1 + $0x350] sm:$0xff]
    %v123 = vld [vmem:[%s1 + $0x358] sm:$0xff]
    %v124 = vld [vmem:[%s1 + $0x360] sm:$0xff]
    %v125 = vld [vmem:[%s1 + $0x368] sm:$0xff]
    %v126 = vld [vmem:[%s1 + $0x370] sm:$0xff]
    %v127 = vld [vmem:[%s1 + $0x378] sm:$0xff]
    %v128 = vld [vmem:[%s1 + $0x380] sm:$0xff]
    %v129 = vld [vmem:[%s1 + $0x388] sm:$0xff]
    %v130 = vld [vmem:[%s1 + $0x390] sm:$0xff]
    %v131 = vld [vmem:[%s1 + $0x398] sm:$0xff]
    %v132 = vld [vmem:[%s1 + $0x3a0] sm:$0xff]
    %v133 = vld [vmem:[%s1 + $0x3a8] sm:$0xff]
    %v134 = vld [vmem:[%s1 + $0x3b0] sm:$0xff]
    %v135 = vld [vmem:[%s1 + $0x3b8] sm:$0xff]
    %v136 = vld [vmem:[%s1 + $0x3c0] sm:$0xff]
    %v137 = vld [vmem:[%s1 + $0x3c8] sm:$0xff]
    %v138 = vld [vmem:[%s1 + $0x3d0] sm:$0xff]
    %v139 = vld [vmem:[%s1 + $0x3d8] sm:$0xff]
    %v140 = vld [vmem:[%s1 + $0x3e0] sm:$0xff]
    %v141 = vld [vmem:[%s1 + $0x3e8] sm:$0xff]
    %v142 = vld [vmem:[%s1 + $0x3f0] sm:$0xff]
    %v143 = vld [vmem:[%s1 + $0x3f8] sm:$0xff]
    %v144 = vld [vmem:[%s2] sm:$0x3]
    %v146 = vlaneseq
    %v147 = vshrl.u32 %v146, 7
    %v148 = vsub.s32 0, %v147
    %v149 = vrot.slane %v144, %v148
    %v150 = vlaneseq
    %v151 = vshrl.u32 %v150, 7
    %v152 = vsub.s32 1, %v151
    %v153 = vrot.slane %v144, %v152
    %v157 = vcombine.high %v15, %v15
    %v159 = vunpack.c.l.s4 1966171168
    %v160 = vunpack.c.0.s8 %v159
    %v161 = vlaneseq
    %v162 = vshrl.u32 %v161, 7
    %v163 = vsub.s32 %v160, %v162
    %v164 = vrot.slane %v15, %v163
    %v166 = vunpack.c.l.s4 1966171168
    %v167 = vunpack.c.0.s8 %v166
    %v168 = vlaneseq
    %v169 = vshrl.u32 %v168, 7
    %v170 = vsub.s32 %v167, %v169
    %v171 = vrot.slane %v157, %v170
    %v172 = vcombine.high %v164, %v164
    %v173 = vcombine.high %v171, %v171
    %v175 = vunpack.c.l.s4 1966171168
    %v176 = vunpack.c.0.s8 %v175
    %v177 = vlaneseq
    %v178 = vshrl.u32 %v177, 7
    %v179 = vsub.s32 %v176, %v178
    %v180 = vrot.slane %v164, %v179
    %v182 = vunpack.c.l.s4 1966171168
    %v183 = vunpack.c.0.s8 %v182
    %v184 = vlaneseq
    %v185 = vshrl.u32 %v184, 7
    %v186 = vsub.s32 %v183, %v185
    %v187 = vrot.slane %v171, %v186
    %v189 = vunpack.c.l.s4 1966171168
    %v190 = vunpack.c.0.s8 %v189
    %v191 = vlaneseq
    %v192 = vshrl.u32 %v191, 7
    %v193 = vsub.s32 %v190, %v192
    %v194 = vrot.slane %v172, %v193
    %v196 = vunpack.c.l.s4 1966171168
    %v197 = vunpack.c.0.s8 %v196
    %v198 = vlaneseq
    %v199 = vshrl.u32 %v198, 7
    %v200 = vsub.s32 %v197, %v199
    %v201 = vrot.slane %v173, %v200
    %v202 = vcombine.high %v180, %v180
    %v203 = vcombine.high %v187, %v187
    %v204 = vcombine.high %v194, %v194
    %v205 = vcombine.high %v201, %v201
    %v342 = vunpack.c.l.b16 %v16
    %v343 = vunpack.c.h.b16 %v16
    %v344 = vunpack.c.l.b16 %v17
    %v345 = vunpack.c.h.b16 %v17
    %v346 = vunpack.c.l.b16 %v18
    %v347 = vunpack.c.h.b16 %v18
    %v348 = vunpack.c.l.b16 %v19
    %v349 = vunpack.c.h.b16 %v19
    %v350 = vunpack.c.l.b16 %v20
    %v351 = vunpack.c.h.b16 %v20
    %v352 = vunpack.c.l.b16 %v21
    %v353 = vunpack.c.h.b16 %v21
    %v354 = vunpack.c.l.b16 %v22
    %v355 = vunpack.c.h.b16 %v22
    %v356 = vunpack.c.l.b16 %v23
    %v357 = vunpack.c.h.b16 %v23
    %v358 = vunpack.c.l.b16 %v24
    %v359 = vunpack.c.h.b16 %v24
    %v360 = vunpack.c.l.b16 %v25
    %v361 = vunpack.c.h.b16 %v25
    %v362 = vunpack.c.l.b16 %v26
    %v363 = vunpack.c.h.b16 %v26
    %v364 = vunpack.c.l.b16 %v27
    %v365 = vunpack.c.h.b16 %v27
    %v366 = vunpack.c.l.b16 %v28
    %v367 = vunpack.c.h.b16 %v28
    %v368 = vunpack.c.l.b16 %v29
    %v369 = vunpack.c.h.b16 %v29
    %v370 = vunpack.c.l.b16 %v30
    %v371 = vunpack.c.h.b16 %v30
    %v372 = vunpack.c.l.b16 %v31
    %v373 = vunpack.c.h.b16 %v31
    %v374 = vunpack.c.l.b16 %v32
    %v375 = vunpack.c.h.b16 %v32
    %v376 = vunpack.c.l.b16 %v33
    %v377 = vunpack.c.h.b16 %v33
    %v378 = vunpack.c.l.b16 %v34
    %v379 = vunpack.c.h.b16 %v34
    %v380 = vunpack.c.l.b16 %v35
    %v381 = vunpack.c.h.b16 %v35
    %v382 = vunpack.c.l.b16 %v36
    %v383 = vunpack.c.h.b16 %v36
    %v384 = vunpack.c.l.b16 %v37
    %v385 = vunpack.c.h.b16 %v37
    %v386 = vunpack.c.l.b16 %v38
    %v387 = vunpack.c.h.b16 %v38
    %v388 = vunpack.c.l.b16 %v39
    %v389 = vunpack.c.h.b16 %v39
    %v390 = vunpack.c.l.b16 %v40
    %v391 = vunpack.c.h.b16 %v40
    %v392 = vunpack.c.l.b16 %v41
    %v393 = vunpack.c.h.b16 %v41
    %v394 = vunpack.c.l.b16 %v42
    %v395 = vunpack.c.h.b16 %v42
    %v396 = vunpack.c.l.b16 %v43
    %v397 = vunpack.c.h.b16 %v43
    %v398 = vunpack.c.l.b16 %v44
    %v399 = vunpack.c.h.b16 %v44
    %v400 = vunpack.c.l.b16 %v45
    %v401 = vunpack.c.h.b16 %v45
    %v402 = vunpack.c.l.b16 %v46
    %v403 = vunpack.c.h.b16 %v46
    %v404 = vunpack.c.l.b16 %v47
    %v405 = vunpack.c.h.b16 %v47
    %v406 = vunpack.c.l.b16 %v48
    %v407 = vunpack.c.h.b16 %v48
    %v408 = vunpack.c.l.b16 %v49
    %v409 = vunpack.c.h.b16 %v49
    %v410 = vunpack.c.l.b16 %v50
    %v411 = vunpack.c.h.b16 %v50
    %v412 = vunpack.c.l.b16 %v51
    %v413 = vunpack.c.h.b16 %v51
    %v414 = vunpack.c.l.b16 %v52
    %v415 = vunpack.c.h.b16 %v52
    %v416 = vunpack.c.l.b16 %v53
    %v417 = vunpack.c.h.b16 %v53
    %v418 = vunpack.c.l.b16 %v54
    %v419 = vunpack.c.h.b16 %v54
    %v420 = vunpack.c.l.b16 %v55
    %v421 = vunpack.c.h.b16 %v55
    %v422 = vunpack.c.l.b16 %v56
    %v423 = vunpack.c.h.b16 %v56
    %v424 = vunpack.c.l.b16 %v57
    %v425 = vunpack.c.h.b16 %v57
    %v426 = vunpack.c.l.b16 %v58
    %v427 = vunpack.c.h.b16 %v58
    %v428 = vunpack.c.l.b16 %v59
    %v429 = vunpack.c.h.b16 %v59
    %v430 = vunpack.c.l.b16 %v60
    %v431 = vunpack.c.h.b16 %v60
    %v432 = vunpack.c.l.b16 %v61
    %v433 = vunpack.c.h.b16 %v61
    %v434 = vunpack.c.l.b16 %v62
    %v435 = vunpack.c.h.b16 %v62
    %v436 = vunpack.c.l.b16 %v63
    %v437 = vunpack.c.h.b16 %v63
    %v438 = vunpack.c.l.b16 %v64
    %v439 = vunpack.c.h.b16 %v64
    %v440 = vunpack.c.l.b16 %v65
    %v441 = vunpack.c.h.b16 %v65
    %v442 = vunpack.c.l.b16 %v66
    %v443 = vunpack.c.h.b16 %v66
    %v444 = vunpack.c.l.b16 %v67
    %v445 = vunpack.c.h.b16 %v67
    %v446 = vunpack.c.l.b16 %v68
    %v447 = vunpack.c.h.b16 %v68
    %v448 = vunpack.c.l.b16 %v69
    %v449 = vunpack.c.h.b16 %v69
    %v450 = vunpack.c.l.b16 %v70
    %v451 = vunpack.c.h.b16 %v70
    %v452 = vunpack.c.l.b16 %v71
    %v453 = vunpack.c.h.b16 %v71
    %v454 = vunpack.c.l.b16 %v72
    %v455 = vunpack.c.h.b16 %v72
    %v456 = vunpack.c.l.b16 %v73
    %v457 = vunpack.c.h.b16 %v73
    %v458 = vunpack.c.l.b16 %v74
    %v459 = vunpack.c.h.b16 %v74
    %v460 = vunpack.c.l.b16 %v75
    %v461 = vunpack.c.h.b16 %v75
    %v462 = vunpack.c.l.b16 %v76
    %v463 = vunpack.c.h.b16 %v76
    %v464 = vunpack.c.l.b16 %v77
    %v465 = vunpack.c.h.b16 %v77
    %v466 = vunpack.c.l.b16 %v78
    %v467 = vunpack.c.h.b16 %v78
    %v468 = vunpack.c.l.b16 %v79
    %v469 = vunpack.c.h.b16 %v79
    %v470 = vunpack.c.l.b16 %v80
    %v471 = vunpack.c.h.b16 %v80
    %v472 = vunpack.c.l.b16 %v81
    %v473 = vunpack.c.h.b16 %v81
    %v474 = vunpack.c.l.b16 %v82
    %v475 = vunpack.c.h.b16 %v82
    %v476 = vunpack.c.l.b16 %v83
    %v477 = vunpack.c.h.b16 %v83
    %v478 = vunpack.c.l.b16 %v84
    %v479 = vunpack.c.h.b16 %v84
    %v480 = vunpack.c.l.b16 %v85
    %v481 = vunpack.c.h.b16 %v85
    %v482 = vunpack.c.l.b16 %v86
    %v483 = vunpack.c.h.b16 %v86
    %v484 = vunpack.c.l.b16 %v87
    %v485 = vunpack.c.h.b16 %v87
    %v486 = vunpack.c.l.b16 %v88
    %v487 = vunpack.c.h.b16 %v88
    %v488 = vunpack.c.l.b16 %v89
    %v489 = vunpack.c.h.b16 %v89
    %v490 = vunpack.c.l.b16 %v90
    %v491 = vunpack.c.h.b16 %v90
    %v492 = vunpack.c.l.b16 %v91
    %v493 = vunpack.c.h.b16 %v91
    %v494 = vunpack.c.l.b16 %v92
    %v495 = vunpack.c.h.b16 %v92
    %v496 = vunpack.c.l.b16 %v93
    %v497 = vunpack.c.h.b16 %v93
    %v498 = vunpack.c.l.b16 %v94
    %v499 = vunpack.c.h.b16 %v94
    %v500 = vunpack.c.l.b16 %v95
    %v501 = vunpack.c.h.b16 %v95
    %v502 = vunpack.c.l.b16 %v96
    %v503 = vunpack.c.h.b16 %v96
    %v504 = vunpack.c.l.b16 %v97
    %v505 = vunpack.c.h.b16 %v97
    %v506 = vunpack.c.l.b16 %v98
    %v507 = vunpack.c.h.b16 %v98
    %v508 = vunpack.c.l.b16 %v99
    %v509 = vunpack.c.h.b16 %v99
    %v510 = vunpack.c.l.b16 %v100
    %v511 = vunpack.c.h.b16 %v100
    %v512 = vunpack.c.l.b16 %v101
    %v513 = vunpack.c.h.b16 %v101
    %v514 = vunpack.c.l.b16 %v102
    %v515 = vunpack.c.h.b16 %v102
    %v516 = vunpack.c.l.b16 %v103
    %v517 = vunpack.c.h.b16 %v103
    %v518 = vunpack.c.l.b16 %v104
    %v519 = vunpack.c.h.b16 %v104
    %v520 = vunpack.c.l.b16 %v105
    %v521 = vunpack.c.h.b16 %v105
    %v522 = vunpack.c.l.b16 %v106
    %v523 = vunpack.c.h.b16 %v106
    %v524 = vunpack.c.l.b16 %v107
    %v525 = vunpack.c.h.b16 %v107
    %v526 = vunpack.c.l.b16 %v108
    %v527 = vunpack.c.h.b16 %v108
    %v528 = vunpack.c.l.b16 %v109
    %v529 = vunpack.c.h.b16 %v109
    %v530 = vunpack.c.l.b16 %v110
    %v531 = vunpack.c.h.b16 %v110
    %v532 = vunpack.c.l.b16 %v111
    %v533 = vunpack.c.h.b16 %v111
    %v534 = vunpack.c.l.b16 %v112
    %v535 = vunpack.c.h.b16 %v112
    %v536 = vunpack.c.l.b16 %v113
    %v537 = vunpack.c.h.b16 %v113
    %v538 = vunpack.c.l.b16 %v114
    %v539 = vunpack.c.h.b16 %v114
    %v540 = vunpack.c.l.b16 %v115
    %v541 = vunpack.c.h.b16 %v115
    %v542 = vunpack.c.l.b16 %v116
    %v543 = vunpack.c.h.b16 %v116
    %v544 = vunpack.c.l.b16 %v117
    %v545 = vunpack.c.h.b16 %v117
    %v546 = vunpack.c.l.b16 %v118
    %v547 = vunpack.c.h.b16 %v118
    %v548 = vunpack.c.l.b16 %v119
    %v549 = vunpack.c.h.b16 %v119
    %v550 = vunpack.c.l.b16 %v120
    %v551 = vunpack.c.h.b16 %v120
    %v552 = vunpack.c.l.b16 %v121
    %v553 = vunpack.c.h.b16 %v121
    %v554 = vunpack.c.l.b16 %v122
    %v555 = vunpack.c.h.b16 %v122
    %v556 = vunpack.c.l.b16 %v123
    %v557 = vunpack.c.h.b16 %v123
    %v558 = vunpack.c.l.b16 %v124
    %v559 = vunpack.c.h.b16 %v124
    %v560 = vunpack.c.l.b16 %v125
    %v561 = vunpack.c.h.b16 %v125
    %v562 = vunpack.c.l.b16 %v126
    %v563 = vunpack.c.h.b16 %v126
    %v564 = vunpack.c.l.b16 %v127
    %v565 = vunpack.c.h.b16 %v127
    %v566 = vunpack.c.l.b16 %v128
    %v567 = vunpack.c.h.b16 %v128
    %v568 = vunpack.c.l.b16 %v129
    %v569 = vunpack.c.h.b16 %v129
    %v570 = vunpack.c.l.b16 %v130
    %v571 = vunpack.c.h.b16 %v130
    %v572 = vunpack.c.l.b16 %v131
    %v573 = vunpack.c.h.b16 %v131
    %v574 = vunpack.c.l.b16 %v132
    %v575 = vunpack.c.h.b16 %v132
    %v576 = vunpack.c.l.b16 %v133
    %v577 = vunpack.c.h.b16 %v133
    %v578 = vunpack.c.l.b16 %v134
    %v579 = vunpack.c.h.b16 %v134
    %v580 = vunpack.c.l.b16 %v135
    %v581 = vunpack.c.h.b16 %v135
    %v582 = vunpack.c.l.b16 %v136
    %v583 = vunpack.c.h.b16 %v136
    %v584 = vunpack.c.l.b16 %v137
    %v585 = vunpack.c.h.b16 %v137
    %v586 = vunpack.c.l.b16 %v138
    %v587 = vunpack.c.h.b16 %v138
    %v588 = vunpack.c.l.b16 %v139
    %v589 = vunpack.c.h.b16 %v139
    %v590 = vunpack.c.l.b16 %v140
    %v591 = vunpack.c.h.b16 %v140
    %v592 = vunpack.c.l.b16 %v141
    %v593 = vunpack.c.h.b16 %v141
    %v594 = vunpack.c.l.b16 %v142
    %v595 = vunpack.c.h.b16 %v142
    %v596 = vunpack.c.l.b16 %v143
    %v597 = vunpack.c.h.b16 %v143
    %v598 = vpack.c.b16 %v344, %v342
    %v599 = vpack.c.b16 %v345, %v343
    %v600 = vpack.c.b16 %v348, %v346
    %v601 = vpack.c.b16 %v349, %v347
    %v602 = vpack.c.b16 %v352, %v350
    %v603 = vpack.c.b16 %v353, %v351
    %v604 = vpack.c.b16 %v356, %v354
    %v605 = vpack.c.b16 %v357, %v355
    %v606 = vpack.c.b16 %v360, %v358
    %v607 = vpack.c.b16 %v361, %v359
    %v608 = vpack.c.b16 %v364, %v362
    %v609 = vpack.c.b16 %v365, %v363
    %v610 = vpack.c.b16 %v368, %v366
    %v611 = vpack.c.b16 %v369, %v367
    %v612 = vpack.c.b16 %v372, %v370
    %v613 = vpack.c.b16 %v373, %v371
    %v614 = vpack.c.b16 %v376, %v374
    %v615 = vpack.c.b16 %v377, %v375
    %v616 = vpack.c.b16 %v380, %v378
    %v617 = vpack.c.b16 %v381, %v379
    %v618 = vpack.c.b16 %v384, %v382
    %v619 = vpack.c.b16 %v385, %v383
    %v620 = vpack.c.b16 %v388, %v386
    %v621 = vpack.c.b16 %v389, %v387
    %v622 = vpack.c.b16 %v392, %v390
    %v623 = vpack.c.b16 %v393, %v391
    %v624 = vpack.c.b16 %v396, %v394
    %v625 = vpack.c.b16 %v397, %v395
    %v626 = vpack.c.b16 %v400, %v398
    %v627 = vpack.c.b16 %v401, %v399
    %v628 = vpack.c.b16 %v404, %v402
    %v629 = vpack.c.b16 %v405, %v403
    %v630 = vpack.c.b16 %v408, %v406
    %v631 = vpack.c.b16 %v409, %v407
    %v632 = vpack.c.b16 %v412, %v410
    %v633 = vpack.c.b16 %v413, %v411
    %v634 = vpack.c.b16 %v416, %v414
    %v635 = vpack.c.b16 %v417, %v415
    %v636 = vpack.c.b16 %v420, %v418
    %v637 = vpack.c.b16 %v421, %v419
    %v638 = vpack.c.b16 %v424, %v422
    %v639 = vpack.c.b16 %v425, %v423
    %v640 = vpack.c.b16 %v428, %v426
    %v641 = vpack.c.b16 %v429, %v427
    %v642 = vpack.c.b16 %v432, %v430
    %v643 = vpack.c.b16 %v433, %v431
    %v644 = vpack.c.b16 %v436, %v434
    %v645 = vpack.c.b16 %v437, %v435
    %v646 = vpack.c.b16 %v440, %v438
    %v647 = vpack.c.b16 %v441, %v439
    %v648 = vpack.c.b16 %v444, %v442
    %v649 = vpack.c.b16 %v445, %v443
    %v650 = vpack.c.b16 %v448, %v446
    %v651 = vpack.c.b16 %v449, %v447
    %v652 = vpack.c.b16 %v452, %v450
    %v653 = vpack.c.b16 %v453, %v451
    %v654 = vpack.c.b16 %v456, %v454
    %v655 = vpack.c.b16 %v457, %v455
    %v656 = vpack.c.b16 %v460, %v458
    %v657 = vpack.c.b16 %v461, %v459
    %v658 = vpack.c.b16 %v464, %v462
    %v659 = vpack.c.b16 %v465, %v463
    %v660 = vpack.c.b16 %v468, %v466
    %v661 = vpack.c.b16 %v469, %v467
    %v662 = vpack.c.b16 %v472, %v470
    %v663 = vpack.c.b16 %v473, %v471
    %v664 = vpack.c.b16 %v476, %v474
    %v665 = vpack.c.b16 %v477, %v475
    %v666 = vpack.c.b16 %v480, %v478
    %v667 = vpack.c.b16 %v481, %v479
    %v668 = vpack.c.b16 %v484, %v482
    %v669 = vpack.c.b16 %v485, %v483
    %v670 = vpack.c.b16 %v488, %v486
    %v671 = vpack.c.b16 %v489, %v487
    %v672 = vpack.c.b16 %v492, %v490
    %v673 = vpack.c.b16 %v493, %v491
    %v674 = vpack.c.b16 %v496, %v494
    %v675 = vpack.c.b16 %v497, %v495
    %v676 = vpack.c.b16 %v500, %v498
    %v677 = vpack.c.b16 %v501, %v499
    %v678 = vpack.c.b16 %v504, %v502
    %v679 = vpack.c.b16 %v505, %v503
    %v680 = vpack.c.b16 %v508, %v506
    %v681 = vpack.c.b16 %v509, %v507
    %v682 = vpack.c.b16 %v512, %v510
    %v683 = vpack.c.b16 %v513, %v511
    %v684 = vpack.c.b16 %v516, %v514
    %v685 = vpack.c.b16 %v517, %v515
    %v686 = vpack.c.b16 %v520, %v518
    %v687 = vpack.c.b16 %v521, %v519
    %v688 = vpack.c.b16 %v524, %v522
    %v689 = vpack.c.b16 %v525, %v523
    %v690 = vpack.c.b16 %v528, %v526
    %v691 = vpack.c.b16 %v529, %v527
    %v692 = vpack.c.b16 %v532, %v530
    %v693 = vpack.c.b16 %v533, %v531
    %v694 = vpack.c.b16 %v536, %v534
    %v695 = vpack.c.b16 %v537, %v535
    %v696 = vpack.c.b16 %v540, %v538
    %v697 = vpack.c.b16 %v541, %v539
    %v698 = vpack.c.b16 %v544, %v542
    %v699 = vpack.c.b16 %v545, %v543
    %v700 = vpack.c.b16 %v548, %v546
    %v701 = vpack.c.b16 %v549, %v547
    %v702 = vpack.c.b16 %v552, %v550
    %v703 = vpack.c.b16 %v553, %v551
    %v704 = vpack.c.b16 %v556, %v554
    %v705 = vpack.c.b16 %v557, %v555
    %v706 = vpack.c.b16 %v560, %v558
    %v707 = vpack.c.b16 %v561, %v559
    %v708 = vpack.c.b16 %v564, %v562
    %v709 = vpack.c.b16 %v565, %v563
    %v710 = vpack.c.b16 %v568, %v566
    %v711 = vpack.c.b16 %v569, %v567
    %v712 = vpack.c.b16 %v572, %v570
    %v713 = vpack.c.b16 %v573, %v571
    %v714 = vpack.c.b16 %v576, %v574
    %v715 = vpack.c.b16 %v577, %v575
    %v716 = vpack.c.b16 %v580, %v578
    %v717 = vpack.c.b16 %v581, %v579
    %v718 = vpack.c.b16 %v584, %v582
    %v719 = vpack.c.b16 %v585, %v583
    %v720 = vpack.c.b16 %v588, %v586
    %v721 = vpack.c.b16 %v589, %v587
    %v722 = vpack.c.b16 %v592, %v590
    %v723 = vpack.c.b16 %v593, %v591
    %v724 = vpack.c.b16 %v596, %v594
    %v725 = vpack.c.b16 %v597, %v595
    %854 = vmatprep.subr.bf16.mxu0 %v599
    %855 = vmatpush1.bf16.msra.mxu0 %v598
    %856 = vmatprep.subr.bf16.mxu0 %v601
    %857 = vmatpush1.bf16.msra.mxu0 %v600
    %858 = vmatprep.subr.bf16.mxu0 %v603
    %859 = vmatpush1.bf16.msra.mxu0 %v602
    %860 = vmatprep.subr.bf16.mxu0 %v605
    %861 = vmatpush1.bf16.msra.mxu0 %v604
    %862 = vmatprep.subr.bf16.mxu0 %v607
    %863 = vmatpush1.bf16.msra.mxu0 %v606
    %864 = vmatprep.subr.bf16.mxu0 %v609
    %865 = vmatpush1.bf16.msra.mxu0 %v608
    %866 = vmatprep.subr.bf16.mxu0 %v611
    %867 = vmatpush1.bf16.msra.mxu0 %v610
    %868 = vmatprep.subr.bf16.mxu0 %v613
    %869 = vmatpush1.bf16.msra.mxu0 %v612
    %870 = vmatprep.subr.bf16.mxu0 %v615
    %871 = vmatpush1.bf16.msra.mxu0 %v614
    %872 = vmatprep.subr.bf16.mxu0 %v617
    %873 = vmatpush1.bf16.msra.mxu0 %v616
    %874 = vmatprep.subr.bf16.mxu0 %v619
    %875 = vmatpush1.bf16.msra.mxu0 %v618
    %876 = vmatprep.subr.bf16.mxu0 %v621
    %877 = vmatpush1.bf16.msra.mxu0 %v620
    %878 = vmatprep.subr.bf16.mxu0 %v623
    %879 = vmatpush1.bf16.msra.mxu0 %v622
    %880 = vmatprep.subr.bf16.mxu0 %v625
    %881 = vmatpush1.bf16.msra.mxu0 %v624
    %882 = vmatprep.subr.bf16.mxu0 %v627
    %883 = vmatpush1.bf16.msra.mxu0 %v626
    %884 = vmatprep.subr.bf16.mxu0 %v629
    %885 = vmatpush1.bf16.msra.mxu0 %v628
    %886 = vmatprep.mubr.bf16.mxu0 %v194
    %887 = vmatmul.mubr.bf16.gmra.mrb[0].mxu0 %v180
    %v888 = vpop.f32.mrb[0].mxu0
    %v889 = vadd.f32 %v149, %v888
    %v890 = vpop.f32.mrb[0].mxu0
    %v891 = vadd.f32 %v153, %v890
    %v892 = vpop.f32.mrb[0].mxu0
    %v893 = vpop.f32.mrb[0].mxu0
    %894 = vdwg.mxu0
    %895 = vmatprep.subr.bf16.mxu0 %v631
    %896 = vmatpush1.bf16.msra.mxu0 %v630
    %897 = vmatprep.subr.bf16.mxu0 %v633
    %898 = vmatpush1.bf16.msra.mxu0 %v632
    %899 = vmatprep.subr.bf16.mxu0 %v635
    %900 = vmatpush1.bf16.msra.mxu0 %v634
    %901 = vmatprep.subr.bf16.mxu0 %v637
    %902 = vmatpush1.bf16.msra.mxu0 %v636
    %903 = vmatprep.subr.bf16.mxu0 %v639
    %904 = vmatpush1.bf16.msra.mxu0 %v638
    %905 = vmatprep.subr.bf16.mxu0 %v641
    %906 = vmatpush1.bf16.msra.mxu0 %v640
    %907 = vmatprep.subr.bf16.mxu0 %v643
    %908 = vmatpush1.bf16.msra.mxu0 %v642
    %909 = vmatprep.subr.bf16.mxu0 %v645
    %910 = vmatpush1.bf16.msra.mxu0 %v644
    %911 = vmatprep.subr.bf16.mxu0 %v647
    %912 = vmatpush1.bf16.msra.mxu0 %v646
    %913 = vmatprep.subr.bf16.mxu0 %v649
    %914 = vmatpush1.bf16.msra.mxu0 %v648
    %915 = vmatprep.subr.bf16.mxu0 %v651
    %916 = vmatpush1.bf16.msra.mxu0 %v650
    %917 = vmatprep.subr.bf16.mxu0 %v653
    %918 = vmatpush1.bf16.msra.mxu0 %v652
    %919 = vmatprep.subr.bf16.mxu0 %v655
    %920 = vmatpush1.bf16.msra.mxu0 %v654
    %921 = vmatprep.subr.bf16.mxu0 %v657
    %922 = vmatpush1.bf16.msra.mxu0 %v656
    %923 = vmatprep.subr.bf16.mxu0 %v659
    %924 = vmatpush1.bf16.msra.mxu0 %v658
    %925 = vmatprep.subr.bf16.mxu0 %v661
    %926 = vmatpush1.bf16.msra.mxu0 %v660
    %927 = vmatprep.mubr.bf16.mxu0 %v204
    %928 = vmatmul.mubr.bf16.gmra.mrb[0].mxu0 %v202
    %v929 = vpop.f32.mrb[0].mxu0
    %v930 = vadd.f32 %v889, %v929
    %v931 = vpop.f32.mrb[0].mxu0
    %v932 = vadd.f32 %v891, %v931
    %v933 = vpop.f32.mrb[0].mxu0
    %v934 = vpop.f32.mrb[0].mxu0
    %935 = vdwg.mxu0
    %936 = vmatprep.subr.bf16.mxu0 %v663
    %937 = vmatpush1.bf16.msra.mxu0 %v662
    %938 = vmatprep.subr.bf16.mxu0 %v665
    %939 = vmatpush1.bf16.msra.mxu0 %v664
    %940 = vmatprep.subr.bf16.mxu0 %v667
    %941 = vmatpush1.bf16.msra.mxu0 %v666
    %942 = vmatprep.subr.bf16.mxu0 %v669
    %943 = vmatpush1.bf16.msra.mxu0 %v668
    %944 = vmatprep.subr.bf16.mxu0 %v671
    %945 = vmatpush1.bf16.msra.mxu0 %v670
    %946 = vmatprep.subr.bf16.mxu0 %v673
    %947 = vmatpush1.bf16.msra.mxu0 %v672
    %948 = vmatprep.subr.bf16.mxu0 %v675
    %949 = vmatpush1.bf16.msra.mxu0 %v674
    %950 = vmatprep.subr.bf16.mxu0 %v677
    %951 = vmatpush1.bf16.msra.mxu0 %v676
    %952 = vmatprep.subr.bf16.mxu0 %v679
    %953 = vmatpush1.bf16.msra.mxu0 %v678
    %954 = vmatprep.subr.bf16.mxu0 %v681
    %955 = vmatpush1.bf16.msra.mxu0 %v680
    %956 = vmatprep.subr.bf16.mxu0 %v683
    %957 = vmatpush1.bf16.msra.mxu0 %v682
    %958 = vmatprep.subr.bf16.mxu0 %v685
    %959 = vmatpush1.bf16.msra.mxu0 %v684
    %960 = vmatprep.subr.bf16.mxu0 %v687
    %961 = vmatpush1.bf16.msra.mxu0 %v686
    %962 = vmatprep.subr.bf16.mxu0 %v689
    %963 = vmatpush1.bf16.msra.mxu0 %v688
    %964 = vmatprep.subr.bf16.mxu0 %v691
    %965 = vmatpush1.bf16.msra.mxu0 %v690
    %966 = vmatprep.subr.bf16.mxu0 %v693
    %967 = vmatpush1.bf16.msra.mxu0 %v692
    %968 = vmatprep.mubr.bf16.mxu0 %v201
    %969 = vmatmul.mubr.bf16.gmra.mrb[0].mxu0 %v187
    %v970 = vpop.f32.mrb[0].mxu0
    %v971 = vadd.f32 %v930, %v970
    %v972 = vpop.f32.mrb[0].mxu0
    %v973 = vadd.f32 %v932, %v972
    %v974 = vpop.f32.mrb[0].mxu0
    %v975 = vpop.f32.mrb[0].mxu0
    %976 = vdwg.mxu0
    %977 = vmatprep.subr.bf16.mxu0 %v695
    %978 = vmatpush1.bf16.msra.mxu0 %v694
    %979 = vmatprep.subr.bf16.mxu0 %v697
    %980 = vmatpush1.bf16.msra.mxu0 %v696
    %981 = vmatprep.subr.bf16.mxu0 %v699
    %982 = vmatpush1.bf16.msra.mxu0 %v698
    %983 = vmatprep.subr.bf16.mxu0 %v701
    %984 = vmatpush1.bf16.msra.mxu0 %v700
    %985 = vmatprep.subr.bf16.mxu0 %v703
    %986 = vmatpush1.bf16.msra.mxu0 %v702
    %987 = vmatprep.subr.bf16.mxu0 %v705
    %988 = vmatpush1.bf16.msra.mxu0 %v704
    %989 = vmatprep.subr.bf16.mxu0 %v707
    %990 = vmatpush1.bf16.msra.mxu0 %v706
    %991 = vmatprep.subr.bf16.mxu0 %v709
    %992 = vmatpush1.bf16.msra.mxu0 %v708
    %993 = vmatprep.subr.bf16.mxu0 %v711
    %994 = vmatpush1.bf16.msra.mxu0 %v710
    %995 = vmatprep.subr.bf16.mxu0 %v713
    %996 = vmatpush1.bf16.msra.mxu0 %v712
    %997 = vmatprep.subr.bf16.mxu0 %v715
    %998 = vmatpush1.bf16.msra.mxu0 %v714
    %999 = vmatprep.subr.bf16.mxu0 %v717
    %1000 = vmatpush1.bf16.msra.mxu0 %v716
    %1001 = vmatprep.subr.bf16.mxu0 %v719
    %1002 = vmatpush1.bf16.msra.mxu0 %v718
    %1003 = vmatprep.subr.bf16.mxu0 %v721
    %1004 = vmatpush1.bf16.msra.mxu0 %v720
    %1005 = vmatprep.subr.bf16.mxu0 %v723
    %1006 = vmatpush1.bf16.msra.mxu0 %v722
    %1007 = vmatprep.subr.bf16.mxu0 %v725
    %1008 = vmatpush1.bf16.msra.mxu0 %v724
    %1009 = vmatprep.mubr.bf16.mxu0 %v205
    %1010 = vmatmul.mubr.bf16.gmra.mrb[0].mxu0 %v203
    %v1011 = vpop.f32.mrb[0].mxu0
    %v1012 = vadd.f32 %v971, %v1011
    %v1013 = vpop.f32.mrb[0].mxu0
    %v1014 = vadd.f32 %v973, %v1013
    %v1015 = vpop.f32.mrb[0].mxu0
    %v1016 = vpop.f32.mrb[0].mxu0
    %1017 = vdwg.mxu0
    %vm1018 = vcmask 1041408
    %v1019 = vsel %vm1018, %v1012, -inf
    %vm1020 = vcmask 17408
    %v1021 = vsel %vm1020, %v1014, -inf
    %v1022 = vmax.f32 %v1019, %v1021
    %1023 = vmax.xlane.f32.xlu0 %v1022
    %v1024 = vpop.xlane.xlu0 %1023
    %v1025 = vsub.f32 %v1012, %v1024
    %v1026 = vsub.f32 %v1014, %v1024
    %v1027 = vmul.f32 %v1025, 1.442695
    %v1028 = vpow.pop %v1027
    %v1029 = vmul.f32 %v1026, 1.442695
    %v1030 = vpow.pop %v1029
    %v1031 = vsel %vm1018, %v1028, 0.0
    %v1032 = vsel %vm1020, %v1030, 0.0
    %v1033 = vadd.f32 %v1031, %v1032
    %1034 = vadd.xlane.f32.xlu0 %v1033
    %v1035 = vpop.xlane.xlu0 %1034
    %v1036 = vrcp.pop %v1035
    %v1037 = vmul.f32 %v1028, %v1036
    %v1038 = vmul.f32 %v1030, %v1036
    %v1041 = vcombine.low %v1037, %v1038
    %v1043 = vunpack.c.l.s4 1983009808
    %v1044 = vunpack.c.0.s8 %v1043
    %v1045 = vlaneseq
    %v1046 = vshrl.u32 %v1045, 7
    %v1047 = vsub.s32 %v1044, %v1046
    %v1048 = vrot.slane %v1041, %v1047
    %vm1050 = vcmask 19458
    %vm1051 = vmor %vm1050, %vm1018
    %1052 = vst.msk [vmem:[#allocation2] sm:$0xf] %vm1051, %v1048
    // Predicated region
    $region14: #{_fruits_forward.1} parent=1 // pred_check
      _
    $region15: #{_fruits_forward.1} parent=1 // pred_check_branch
      %1054 = sbr.rel (0) target = $region17
    $region16: #{_fruits_forward.1} parent=1 // pred_region
      %s1056 = ssub.s32 64, 64
      %1057 = vsyncadd [#allocation3], %s1056
      %s1059 = sshll.u32 [#allocation2], 4
      %s1060 = int_to_ptr.vmem [resolvable:$true] %s1059
      %1062 = dma.vmem_to_hbm [thread:$0]  %s1060, 64, %s3, [#allocation3]
    $region17: #{_fruits_forward.1} parent=1 // pred_fallthru
      _
    // Predicated region
    $region18: #{_fruits_forward.1} parent=1 // pred_check
      _
    $region19: #{_fruits_forward.1} parent=1 // pred_check_branch
      %1064 = sbr.rel (0) target = $region21
    $region20: #{_fruits_forward.1} parent=1 // pred_region
      %1065 = dma.done [#allocation3], 64
    $region21: #{_fruits_forward.1} parent=1 // pred_fallthru
      _
    %1066 = vsyncpa [#allocation3], 1

</llo_original>
